<compile_context>
chip_gen: v7x
topology: tpu7x:2x2x1
jax: 0.10.0
libtpu: 0.0.40
codegen_flags: <defaults>
</compile_context>

<pallas_src>
import jax
import jax.numpy as jnp
from jax.experimental import pallas as pl
from jax.experimental.pallas import tpu as pltpu

INPUT_SIZE = 48
H1 = 128
H2 = 64
OUT = 2
OUT_PAD = 128          # layer-3 compute width (full vreg lane width)
NEG_BIG = -1.0e30      # "minus infinity" bias for padded logit columns


def _round_up(n, m):
    return ((n + m - 1) // m) * m


def mlp_kernel(x_ref, w1_ref, b1_ref, w2_ref, b2_ref, w3_ref, b3_ref, o_ref):
    x = x_ref[...]                                                   # (tb, 48) f32

    # Layer 1: Linear(48, 128) + ReLU   (Dropout == identity in eval)
    h1 = jnp.dot(x.astype(jnp.bfloat16), w1_ref[...],
                 preferred_element_type=jnp.float32)
    h1 = jnp.maximum(h1 + b1_ref[...], 0.0)                          # (tb, 128) f32

    # Layer 2: Linear(128, 64) + ReLU   (Dropout == identity in eval)
    h2 = jnp.dot(h1.astype(jnp.bfloat16), w2_ref[...],
                 preferred_element_type=jnp.float32)
    h2 = jnp.maximum(h2 + b2_ref[...], 0.0)                          # (tb, 64) f32

    # Layer 3: Linear(64, 2) computed over 128 padded lanes.  Padded weight
    # columns are 0 and padded bias is -1e30, so padded exp() underflows to
    # exactly 0 and drops out of the softmax sum.
    logits = jnp.dot(h2.astype(jnp.bfloat16), w3_ref[...],
                     preferred_element_type=jnp.float32)
    logits = logits + b3_ref[...]                                    # (tb, 128) f32

    # Numerically stable softmax; exact divide so each row sums to 1.
    m = jnp.max(logits, axis=-1, keepdims=True)
    e = jnp.exp(logits - m)
    probs = e / jnp.sum(e, axis=-1, keepdims=True)

    # Slim writeback: only the 2 real probability columns go to HBM.
    o_ref[...] = probs[:, :OUT]


def prepare_params(w1, b1, w2, b2, w3, b3):
    """One-time (init-time) weight prep: bf16 cast + layer-3 lane padding."""
    w1b = w1.astype(jnp.bfloat16)
    w2b = w2.astype(jnp.bfloat16)
    w3p = jnp.zeros((H2, OUT_PAD), jnp.bfloat16).at[:, :OUT].set(
        w3.astype(jnp.bfloat16))
    b3p = jnp.full((1, OUT_PAD), NEG_BIG, jnp.float32).at[:, :OUT].set(b3)
    return (w1b, b1.astype(jnp.float32), w2b, b2.astype(jnp.float32), w3p, b3p)


def _choose_tile(batch, tile_b):
    """Batch tile: multiple of 8 sublanes; >=2 grid steps when possible (v7x)."""
    if batch <= 8:
        return batch                          # single full-extent block
    tb = min(tile_b, _round_up(batch, 8))
    if pl.cdiv(batch, tb) < 2:                # let megacore shard >=2 steps
        tb = _round_up(pl.cdiv(batch, 2), 8)
    return tb


def mlp_forward(x, params, *, tile_b=4096):
    """x: (B, 48) f32; params: output of prepare_params()."""
    w1b, b1, w2b, b2, w3p, b3p = params
    B = x.shape[0]
    tb = _choose_tile(B, tile_b)
    grid = (pl.cdiv(B, tb),)                  # partial last block handled by Pallas

    flops = 2 * B * (INPUT_SIZE * H1 + H1 * H2 + H2 * OUT_PAD)
    bytes_accessed = (B * INPUT_SIZE * 4 + B * OUT * 4
                      + w1b.size * 2 + w2b.size * 2 + w3p.size * 2
                      + b1.size * 4 + b2.size * 4 + b3p.size * 4)
    cost = pl.CostEstimate(flops=flops,
                           transcendentals=B * OUT_PAD,
                           bytes_accessed=bytes_accessed)

    # TODO(synk): optionally sweep pipeline_mode=pl.Buffered(3) on the x/out
    # specs; left at the default depth-2 to keep the VMEM footprint minimal.
    return pl.pallas_call(
        mlp_kernel,
        out_shape=jax.ShapeDtypeStruct((B, OUT), jnp.float32),
        grid=grid,
        in_specs=[
            pl.BlockSpec((tb, INPUT_SIZE), lambda i: (i, 0)),   # x: batch-tiled
            pl.BlockSpec((INPUT_SIZE, H1), lambda i: (0, 0)),   # weights/biases:
            pl.BlockSpec((1, H1), lambda i: (0, 0)),            #  VMEM-resident
            pl.BlockSpec((H1, H2), lambda i: (0, 0)),
            pl.BlockSpec((1, H2), lambda i: (0, 0)),
            pl.BlockSpec((H2, OUT_PAD), lambda i: (0, 0)),
            pl.BlockSpec((1, OUT_PAD), lambda i: (0, 0)),
        ],
        out_specs=pl.BlockSpec((tb, OUT), lambda i: (i, 0)),
        compiler_params=pltpu.CompilerParams(
            dimension_semantics=("parallel",),
            vmem_limit_bytes=48 * 1024 * 1024),
        cost_estimate=cost,
    )(x, w1b, b1, w2b, b2, w3p, b3p)


def init_params(key):
    """PyTorch-style uniform(-1/sqrt(fan_in), 1/sqrt(fan_in)) init, deterministic."""
    ks = jax.random.split(key, 6)

    def uni(k, shape, fan_in):
        bound = 1.0 / jnp.sqrt(fan_in)
        return jax.random.uniform(k, shape, jnp.float32, -bound, bound)

    # Weights stored (in, out); biases stored (1, out) for 2-D VMEM layout.
    w1 = uni(ks[0], (INPUT_SIZE, H1), INPUT_SIZE)
    b1 = uni(ks[1], (1, H1), INPUT_SIZE)
    w2 = uni(ks[2], (H1, H2), H1)
    b2 = uni(ks[3], (1, H2), H1)
    w3 = uni(ks[4], (H2, OUT), H2)
    b3 = uni(ks[5], (1, OUT), H2)
    return w1, b1, w2, b2, w3, b3


def _reference(x, w1, b1, w2, b2, w3, b3):
    h1 = jnp.maximum(x @ w1 + b1, 0.0)
    h2 = jnp.maximum(h1 @ w2 + b2, 0.0)
    return jax.nn.softmax(h2 @ w3 + b3, axis=1)


if __name__ == "__main__":
    key = jax.random.PRNGKey(0)
    k_x, k_p, k_x2 = jax.random.split(key, 3)
    raw = init_params(k_p)
    params = prepare_params(*raw)            # one-time prep, hoisted off hot path

    # Small case (single grid step).
    B = 8
    x = jax.random.normal(k_x, (B, INPUT_SIZE), jnp.float32)
    out = jax.block_until_ready(mlp_forward(x, params))
    ref = _reference(x, *raw)
    assert out.shape == (B, OUT)
    assert jnp.allclose(jnp.sum(out, axis=1), 1.0, atol=1e-4)
    # bf16 matmul operands -> loosened tolerance vs the full-f32 reference.
    assert jnp.allclose(out, ref, atol=2e-2, rtol=2e-2)

    # Multi-step grid with a non-divisible batch (exercises the partial block).
    B2 = 200
    x2 = jax.random.normal(k_x2, (B2, INPUT_SIZE), jnp.float32)
    out2 = jax.block_until_ready(mlp_forward(x2, params, tile_b=64))
    ref2 = _reference(x2, *raw)
    assert out2.shape == (B2, OUT)
    assert jnp.allclose(jnp.sum(out2, axis=1), 1.0, atol=1e-4)
    assert jnp.allclose(out2, ref2, atol=2e-2, rtol=2e-2)

    print("KERNEL_OK")
</pallas_src>

<mosaic_0001>
module attributes {stable_mosaic.version = 11 : i64} {
  func.func @mlp_kernel(%arg0: i32, %arg1: memref<8x48xf32, #tpu.memory_space<vmem>>, %arg2: memref<48x128xbf16, #tpu.memory_space<vmem>>, %arg3: memref<1x128xf32, #tpu.memory_space<vmem>>, %arg4: memref<128x64xbf16, #tpu.memory_space<vmem>>, %arg5: memref<1x64xf32, #tpu.memory_space<vmem>>, %arg6: memref<64x128xbf16, #tpu.memory_space<vmem>>, %arg7: memref<1x128xf32, #tpu.memory_space<vmem>>, %arg8: memref<8x2xf32, #tpu.memory_space<vmem>>) attributes {dimension_semantics = [#tpu.dimension_semantics<parallel>], iteration_bounds = array<i64: 1>, scalar_prefetch = 0 : i64, scratch_operands = 0 : i64, tpu.core_type = #tpu.core_type<tc>, window_params = [{transform_indices = @transform_0, window_bounds = array<i64: 8, 48>}, {pipeline_mode = #tpu.pipeline_mode<synchronous>, transform_indices = @transform_1, window_bounds = array<i64: 48, 128>}, {pipeline_mode = #tpu.pipeline_mode<synchronous>, transform_indices = @transform_2, window_bounds = array<i64: 1, 128>}, {pipeline_mode = #tpu.pipeline_mode<synchronous>, transform_indices = @transform_3, window_bounds = array<i64: 128, 64>}, {pipeline_mode = #tpu.pipeline_mode<synchronous>, transform_indices = @transform_4, window_bounds = array<i64: 1, 64>}, {pipeline_mode = #tpu.pipeline_mode<synchronous>, transform_indices = @transform_5, window_bounds = array<i64: 64, 128>}, {pipeline_mode = #tpu.pipeline_mode<synchronous>, transform_indices = @transform_6, window_bounds = array<i64: 1, 128>}, {transform_indices = @transform_7, window_bounds = array<i64: 8, 2>}]} {
    %c0 = arith.constant 0 : index
    %c0_0 = arith.constant 0 : index
    %0 = vector.load %arg1[%c0, %c0_0] : memref<8x48xf32, #tpu.memory_space<vmem>>, vector<8x48xf32>
    %1 = arith.truncf %0 : vector<8x48xf32> to vector<8x48xbf16>
    %c0_1 = arith.constant 0 : index
    %c0_2 = arith.constant 0 : index
    %2 = vector.load %arg2[%c0_1, %c0_2] : memref<48x128xbf16, #tpu.memory_space<vmem>>, vector<48x128xbf16>
    %cst = arith.constant dense<0.000000e+00> : vector<8x128xf32>
    %3 = tpu.matmul %1, %2, %cst {dimension_numbers = #tpu.dot_dimension_numbers<[1], [0], [0], [1], [0, 0, 1, 1], [], []>} : vector<8x48xbf16>, vector<48x128xbf16>, vector<8x128xf32> -> vector<8x128xf32>
    %c0_3 = arith.constant 0 : index
    %c0_4 = arith.constant 0 : index
    %4 = vector.load %arg3[%c0_3, %c0_4] : memref<1x128xf32, #tpu.memory_space<vmem>>, vector<1x128xf32>
    %5 = vector.broadcast %4 : vector<1x128xf32> to vector<8x128xf32>
    %6 = arith.addf %3, %5 : vector<8x128xf32>
    %cst_5 = arith.constant 0.000000e+00 : f32
    %7 = vector.broadcast %cst_5 : f32 to vector<8x128xf32>
    %8 = arith.maximumf %6, %7 : vector<8x128xf32>
    %9 = arith.truncf %8 : vector<8x128xf32> to vector<8x128xbf16>
    %c0_6 = arith.constant 0 : index
    %c0_7 = arith.constant 0 : index
    %10 = vector.load %arg4[%c0_6, %c0_7] : memref<128x64xbf16, #tpu.memory_space<vmem>>, vector<128x64xbf16>
    %cst_8 = arith.constant dense<0.000000e+00> : vector<8x64xf32>
    %11 = tpu.matmul %9, %10, %cst_8 {dimension_numbers = #tpu.dot_dimension_numbers<[1], [0], [0], [1], [0, 0, 1, 1], [], []>} : vector<8x128xbf16>, vector<128x64xbf16>, vector<8x64xf32> -> vector<8x64xf32>
    %c0_9 = arith.constant 0 : index
    %c0_10 = arith.constant 0 : index
    %12 = vector.load %arg5[%c0_9, %c0_10] : memref<1x64xf32, #tpu.memory_space<vmem>>, vector<1x64xf32>
    %13 = vector.broadcast %12 : vector<1x64xf32> to vector<8x64xf32>
    %14 = arith.addf %11, %13 : vector<8x64xf32>
    %cst_11 = arith.constant 0.000000e+00 : f32
    %15 = vector.broadcast %cst_11 : f32 to vector<8x64xf32>
    %16 = arith.maximumf %14, %15 : vector<8x64xf32>
    %17 = arith.truncf %16 : vector<8x64xf32> to vector<8x64xbf16>
    %c0_12 = arith.constant 0 : index
    %c0_13 = arith.constant 0 : index
    %18 = vector.load %arg6[%c0_12, %c0_13] : memref<64x128xbf16, #tpu.memory_space<vmem>>, vector<64x128xbf16>
    %cst_14 = arith.constant dense<0.000000e+00> : vector<8x128xf32>
    %19 = tpu.matmul %17, %18, %cst_14 {dimension_numbers = #tpu.dot_dimension_numbers<[1], [0], [0], [1], [0, 0, 1, 1], [], []>} : vector<8x64xbf16>, vector<64x128xbf16>, vector<8x128xf32> -> vector<8x128xf32>
    %c0_15 = arith.constant 0 : index
    %c0_16 = arith.constant 0 : index
    %20 = vector.load %arg7[%c0_15, %c0_16] : memref<1x128xf32, #tpu.memory_space<vmem>>, vector<1x128xf32>
    %21 = vector.broadcast %20 : vector<1x128xf32> to vector<8x128xf32>
    %22 = arith.addf %19, %21 : vector<8x128xf32>
    %cst_17 = arith.constant dense<0xFF800000> : vector<8xf32>
    %23 = vector.multi_reduction <maximumf>, %22, %cst_17 [1] : vector<8x128xf32> to vector<8xf32>
    %24 = vector.shape_cast %23 : vector<8xf32> to vector<8x1xf32>
    %25 = vector.broadcast %24 : vector<8x1xf32> to vector<8x128xf32>
    %26 = arith.subf %22, %25 : vector<8x128xf32>
    %27 = math.exp %26 : vector<8x128xf32>
    %cst_18 = arith.constant dense<0.000000e+00> : vector<8xf32>
    %28 = vector.multi_reduction <add>, %27, %cst_18 [1] : vector<8x128xf32> to vector<8xf32>
    %29 = vector.shape_cast %28 : vector<8xf32> to vector<8x1xf32>
    %30 = vector.broadcast %29 : vector<8x1xf32> to vector<8x128xf32>
    %31 = arith.divf %27, %30 : vector<8x128xf32>
    %32 = vector.extract_strided_slice %31 {offsets = [0, 0], sizes = [8, 2], strides = [1, 1]} : vector<8x128xf32> to vector<8x2xf32>
    %c0_19 = arith.constant 0 : index
    %c0_20 = arith.constant 0 : index
    %33 = vector.load %arg8[%c0_19, %c0_20] : memref<8x2xf32, #tpu.memory_space<vmem>>, vector<8x2xf32>
    tpu.vector_store %arg8[%c0_19, %c0_20], %32 {strides = array<i32>} : memref<8x2xf32, #tpu.memory_space<vmem>>, vector<8x2xf32>,
    return
  }
  func.func @transform_0(%arg0: i32) -> (i32, i32) {
    %c0_i32 = arith.constant 0 : i32
    %c0_i32_0 = arith.constant 0 : i32
    return %arg0, %c0_i32 : i32, i32
  }
  func.func @transform_1(%arg0: i32) -> (i32, i32) {
    %c0_i32 = arith.constant 0 : i32
    %c0_i32_0 = arith.constant 0 : i32
    %c0_i32_1 = arith.constant 0 : i32
    return %c0_i32, %c0_i32_0 : i32, i32
  }
  func.func @transform_2(%arg0: i32) -> (i32, i32) {
    %c0_i32 = arith.constant 0 : i32
    %c0_i32_0 = arith.constant 0 : i32
    %c0_i32_1 = arith.constant 0 : i32
    return %c0_i32, %c0_i32_0 : i32, i32
  }
  func.func @transform_3(%arg0: i32) -> (i32, i32) {
    %c0_i32 = arith.constant 0 : i32
    %c0_i32_0 = arith.constant 0 : i32
    %c0_i32_1 = arith.constant 0 : i32
    return %c0_i32, %c0_i32_0 : i32, i32
  }
  func.func @transform_4(%arg0: i32) -> (i32, i32) {
    %c0_i32 = arith.constant 0 : i32
    %c0_i32_0 = arith.constant 0 : i32
    %c0_i32_1 = arith.constant 0 : i32
    return %c0_i32, %c0_i32_0 : i32, i32
  }
  func.func @transform_5(%arg0: i32) -> (i32, i32) {
    %c0_i32 = arith.constant 0 : i32
    %c0_i32_0 = arith.constant 0 : i32
    %c0_i32_1 = arith.constant 0 : i32
    return %c0_i32, %c0_i32_0 : i32, i32
  }
  func.func @transform_6(%arg0: i32) -> (i32, i32) {
    %c0_i32 = arith.constant 0 : i32
    %c0_i32_0 = arith.constant 0 : i32
    %c0_i32_1 = arith.constant 0 : i32
    return %c0_i32, %c0_i32_0 : i32, i32
  }
  func.func @transform_7(%arg0: i32) -> (i32, i32) {
    %c0_i32 = arith.constant 0 : i32
    %c0_i32_0 = arith.constant 0 : i32
    return %arg0, %c0_i32 : i32, i32
  }
}

</mosaic_0001>

<llo_original>
// kernel: tpu_custom_call.1
$region0: #{tpu_custom_call.1}
  #allocation0 [shape = 'u32[]', space=smem, size = 0x4, offset = 0x4, fixed_abs, tag = 'smem constant byte address 0x4 - core index']
  #allocation1 [shape = 'u32[144,128]{1,0:T(1,128)}', space=vmem, size = 0x12000, scoped, tag = 'internal scratch']
  %s0 = inlined_call_operand.vmem [shape: f32[8,48], index: 0, kind: input, shape index: {}]
  %s1 = inlined_call_operand.vmem [shape: bf16[48,128], index: 1, kind: input, shape index: {}]
  %s2 = inlined_call_operand.vmem [shape: f32[1,128], index: 2, kind: input, shape index: {}]
  %s3 = inlined_call_operand.vmem [shape: bf16[128,64], index: 3, kind: input, shape index: {}]
  %s4 = inlined_call_operand.vmem [shape: f32[1,64], index: 4, kind: input, shape index: {}]
  %s5 = inlined_call_operand.vmem [shape: bf16[64,128], index: 5, kind: input, shape index: {}]
  %s6 = inlined_call_operand.vmem [shape: f32[1,128], index: 6, kind: input, shape index: {}]
  %s7 = inlined_call_operand.vmem [shape: f32[8,2], index: 7, kind: output, shape index: {}]
  %s8 = sld [smem:[#allocation0]]
  $region38: #{tpu_custom_call.1} parent=0
    _
  %s10 = ssub.s32 1, %s8
  %s11 = scalar_select 0, %s10, %s8
  // Predicated region
  $region2: #{tpu_custom_call.1} parent=0 // pred_check
    _
  $region3: #{tpu_custom_call.1} parent=0 // pred_check_branch
    %13 = sbr.rel (0) target = $region5
  $region4: #{tpu_custom_call.1} parent=0 // pred_region
    _
  $region5: #{tpu_custom_call.1} parent=0 // pred_fallthru
    _
  // Predicated region
  $region6: #{tpu_custom_call.1} parent=0 // pred_check
    _
  $region7: #{tpu_custom_call.1} parent=0 // pred_check_branch
    %15 = sbr.rel (0) target = $region9
  $region8: #{tpu_custom_call.1} parent=0 // pred_region
    _
  $region9: #{tpu_custom_call.1} parent=0 // pred_fallthru
    _
  // Predicated region
  $region10: #{tpu_custom_call.1} parent=0 // pred_check
    _
  $region11: #{tpu_custom_call.1} parent=0 // pred_check_branch
    %17 = sbr.rel (0) target = $region13
  $region12: #{tpu_custom_call.1} parent=0 // pred_region
    _
  $region13: #{tpu_custom_call.1} parent=0 // pred_fallthru
    _
  // Predicated region
  $region14: #{tpu_custom_call.1} parent=0 // pred_check
    _
  $region15: #{tpu_custom_call.1} parent=0 // pred_check_branch
    %19 = sbr.rel (0) target = $region17
  $region16: #{tpu_custom_call.1} parent=0 // pred_region
    _
  $region17: #{tpu_custom_call.1} parent=0 // pred_fallthru
    _
  // Predicated region
  $region18: #{tpu_custom_call.1} parent=0 // pred_check
    _
  $region19: #{tpu_custom_call.1} parent=0 // pred_check_branch
    %21 = sbr.rel (0) target = $region21
  $region20: #{tpu_custom_call.1} parent=0 // pred_region
    _
  $region21: #{tpu_custom_call.1} parent=0 // pred_fallthru
    _
  // Predicated region
  $region22: #{tpu_custom_call.1} parent=0 // pred_check
    _
  $region23: #{tpu_custom_call.1} parent=0 // pred_check_branch
    %23 = sbr.rel (0) target = $region25
  $region24: #{tpu_custom_call.1} parent=0 // pred_region
    _
  $region25: #{tpu_custom_call.1} parent=0 // pred_fallthru
    _
  // Predicated region
  $region26: #{tpu_custom_call.1} parent=0 // pred_check
    _
  $region27: #{tpu_custom_call.1} parent=0 // pred_check_branch
    %25 = sbr.rel (0) target = $region29
  $region28: #{tpu_custom_call.1} parent=0 // pred_region
    _
  $region29: #{tpu_custom_call.1} parent=0 // pred_fallthru
    _
  %v27 = vld [vmem:[%s0] sm:$0xff]
  %v28 = vpack.c.bf16 %v27, %v27
  %v29 = vld [vmem:[%s1] sm:$0xf]
  %v30 = vld [vmem:[%s1 + $0x4] sm:$0xf]
  %v31 = vld [vmem:[%s1 + $0x8] sm:$0xf]
  %v32 = vld [vmem:[%s1 + $0xc] sm:$0xf]
  %v33 = vld [vmem:[%s1 + $0x10] sm:$0xf]
  %v34 = vld [vmem:[%s1 + $0x14] sm:$0xf]
  %v35 = vld [vmem:[%s2] sm:$0x1]
  %v37 = vlaneseq
  %v38 = vshrl.u32 %v37, 7
  %v39 = vsub.s32 0, %v38
  %v40 = vrot.slane %v35, %v39
  %v48 = vunpack.c.l.b16 %v29
  %v49 = vunpack.c.l.b16 %v30
  %v50 = vunpack.c.l.b16 %v31
  %v51 = vunpack.c.l.b16 %v32
  %v52 = vunpack.c.l.b16 %v33
  %v53 = vunpack.c.l.b16 %v34
  %v54 = vpack.c.b16 %v49, %v48
  %v55 = vpack.c.b16 %v51, %v50
  %v56 = vpack.c.b16 %v53, %v52
  %vm60 = vcmask 392192
  %v62 = vsel %vm60, %v28, 0
  %64 = vmatprep.subr.bf16.mxu0 0
  %65 = vmatpush1.bf16.msra.mxu0 %v54
  %66 = vmatprep.subr.bf16.mxu0 0
  %67 = vmatpush1.bf16.msra.mxu0 %v55
  %68 = vmatprep.subr.bf16.mxu0 0
  %69 = vmatpush1.bf16.msra.mxu0 %v56
  %70 = vmatprep.subr.bf16.mxu0 0
  %71 = vmatpush1.bf16.msra.mxu0 0
  %72 = vmatprep.subr.bf16.mxu0 0
  %73 = vmatpush1.bf16.msra.mxu0 0
  %74 = vmatprep.subr.bf16.mxu0 0
  %75 = vmatpush1.bf16.msra.mxu0 0
  %76 = vmatprep.subr.bf16.mxu0 0
  %77 = vmatpush1.bf16.msra.mxu0 0
  %78 = vmatprep.subr.bf16.mxu0 0
  %79 = vmatpush1.bf16.msra.mxu0 0
  %80 = vmatprep.subr.bf16.mxu0 0
  %81 = vmatpush1.bf16.msra.mxu0 0
  %82 = vmatprep.subr.bf16.mxu0 0
  %83 = vmatpush1.bf16.msra.mxu0 0
  %84 = vmatprep.subr.bf16.mxu0 0
  %85 = vmatpush1.bf16.msra.mxu0 0
  %86 = vmatprep.subr.bf16.mxu0 0
  %87 = vmatpush1.bf16.msra.mxu0 0
  %88 = vmatprep.subr.bf16.mxu0 0
  %89 = vmatpush1.bf16.msra.mxu0 0
  %90 = vmatprep.subr.bf16.mxu0 0
  %91 = vmatpush1.bf16.msra.mxu0 0
  %92 = vmatprep.subr.bf16.mxu0 0
  %93 = vmatpush1.bf16.msra.mxu0 0
  %94 = vmatprep.subr.bf16.mxu0 0
  %95 = vmatpush1.bf16.msra.mxu0 0
  %96 = vmatprep.mubr.bf16.mxu0 0
  %97 = vmatmul.mubr.bf16.gmra.mrb[0].mxu0 %v62
  %v98 = vpop.f32.mrb[0].mxu0
  %v99 = vadd.f32 %v40, %v98
  %v100 = vpop.f32.mrb[0].mxu0
  %v101 = vpop.f32.mrb[0].mxu0
  %v102 = vpop.f32.mrb[0].mxu0
  %103 = vdwg.mxu0
  %v104 = vmax.f32 %v99, 0.0
  %v105 = vpack.c.bf16 %v104, %v104
  %v106 = vld [vmem:[%s3] sm:$0xf]
  %v107 = vld [vmem:[%s3 + $0x4] sm:$0xf]
  %v108 = vld [vmem:[%s3 + $0x8] sm:$0xf]
  %v109 = vld [vmem:[%s3 + $0xc] sm:$0xf]
  %v110 = vld [vmem:[%s3 + $0x10] sm:$0xf]
  %v111 = vld [vmem:[%s3 + $0x14] sm:$0xf]
  %v112 = vld [vmem:[%s3 + $0x18] sm:$0xf]
  %v113 = vld [vmem:[%s3 + $0x1c] sm:$0xf]
  %v114 = vld [vmem:[%s3 + $0x20] sm:$0xf]
  %v115 = vld [vmem:[%s3 + $0x24] sm:$0xf]
  %v116 = vld [vmem:[%s3 + $0x28] sm:$0xf]
  %v117 = vld [vmem:[%s3 + $0x2c] sm:$0xf]
  %v118 = vld [vmem:[%s3 + $0x30] sm:$0xf]
  %v119 = vld [vmem:[%s3 + $0x34] sm:$0xf]
  %v120 = vld [vmem:[%s3 + $0x38] sm:$0xf]
  %v121 = vld [vmem:[%s3 + $0x3c] sm:$0xf]
  %v122 = vld [vmem:[%s4] sm:$0x1]
  %v124 = vlaneseq
  %v125 = vshrl.u32 %v124, 7
  %v126 = vsub.s32 0, %v125
  %v127 = vrot.slane %v122, %v126
  %v145 = vunpack.c.l.b16 %v106
  %v146 = vunpack.c.l.b16 %v107
  %v147 = vunpack.c.l.b16 %v108
  %v148 = vunpack.c.l.b16 %v109
  %v149 = vunpack.c.l.b16 %v110
  %v150 = vunpack.c.l.b16 %v111
  %v151 = vunpack.c.l.b16 %v112
  %v152 = vunpack.c.l.b16 %v113
  %v153 = vunpack.c.l.b16 %v114
  %v154 = vunpack.c.l.b16 %v115
  %v155 = vunpack.c.l.b16 %v116
  %v156 = vunpack.c.l.b16 %v117
  %v157 = vunpack.c.l.b16 %v118
  %v158 = vunpack.c.l.b16 %v119
  %v159 = vunpack.c.l.b16 %v120
  %v160 = vunpack.c.l.b16 %v121
  %v161 = vpack.c.b16 %v146, %v145
  %v162 = vpack.c.b16 %v148, %v147
  %v163 = vpack.c.b16 %v150, %v149
  %v164 = vpack.c.b16 %v152, %v151
  %v165 = vpack.c.b16 %v154, %v153
  %v166 = vpack.c.b16 %v156, %v155
  %v167 = vpack.c.b16 %v158, %v157
  %v168 = vpack.c.b16 %v160, %v159
  %177 = vmatprep.subr.bf16.mxu0 0
  %178 = vmatpush1.bf16.msra.mxu0 %v161
  %179 = vmatprep.subr.bf16.mxu0 0
  %180 = vmatpush1.bf16.msra.mxu0 %v162
  %181 = vmatprep.subr.bf16.mxu0 0
  %182 = vmatpush1.bf16.msra.mxu0 %v163
  %183 = vmatprep.subr.bf16.mxu0 0
  %184 = vmatpush1.bf16.msra.mxu0 %v164
  %185 = vmatprep.subr.bf16.mxu0 0
  %186 = vmatpush1.bf16.msra.mxu0 %v165
  %187 = vmatprep.subr.bf16.mxu0 0
  %188 = vmatpush1.bf16.msra.mxu0 %v166
  %189 = vmatprep.subr.bf16.mxu0 0
  %190 = vmatpush1.bf16.msra.mxu0 %v167
  %191 = vmatprep.subr.bf16.mxu0 0
  %192 = vmatpush1.bf16.msra.mxu0 %v168
  %193 = vmatprep.subr.bf16.mxu0 0
  %194 = vmatpush1.bf16.msra.mxu0 0
  %195 = vmatprep.subr.bf16.mxu0 0
  %196 = vmatpush1.bf16.msra.mxu0 0
  %197 = vmatprep.subr.bf16.mxu0 0
  %198 = vmatpush1.bf16.msra.mxu0 0
  %199 = vmatprep.subr.bf16.mxu0 0
  %200 = vmatpush1.bf16.msra.mxu0 0
  %201 = vmatprep.subr.bf16.mxu0 0
  %202 = vmatpush1.bf16.msra.mxu0 0
  %203 = vmatprep.subr.bf16.mxu0 0
  %204 = vmatpush1.bf16.msra.mxu0 0
  %205 = vmatprep.subr.bf16.mxu0 0
  %206 = vmatpush1.bf16.msra.mxu0 0
  %207 = vmatprep.subr.bf16.mxu0 0
  %208 = vmatpush1.bf16.msra.mxu0 0
  %209 = vmatprep.mubr.bf16.mxu0 0
  %210 = vmatmul.mubr.bf16.gmra.mrb[0].mxu0 %v105
  %v211 = vpop.f32.mrb[0].mxu0
  %v212 = vadd.f32 %v127, %v211
  %v213 = vpop.f32.mrb[0].mxu0
  %v214 = vpop.f32.mrb[0].mxu0
  %v215 = vpop.f32.mrb[0].mxu0
  %216 = vdwg.mxu0
  %v217 = vmax.f32 %v212, 0.0
  %v218 = vpack.c.bf16 %v217, %v217
  %v219 = vld [vmem:[%s5] sm:$0xf]
  %v220 = vld [vmem:[%s5 + $0x4] sm:$0xf]
  %v221 = vld [vmem:[%s5 + $0x8] sm:$0xf]
  %v222 = vld [vmem:[%s5 + $0xc] sm:$0xf]
  %v223 = vld [vmem:[%s5 + $0x10] sm:$0xf]
  %v224 = vld [vmem:[%s5 + $0x14] sm:$0xf]
  %v225 = vld [vmem:[%s5 + $0x18] sm:$0xf]
  %v226 = vld [vmem:[%s5 + $0x1c] sm:$0xf]
  %v227 = vld [vmem:[%s6] sm:$0x1]
  %v229 = vlaneseq
  %v230 = vshrl.u32 %v229, 7
  %v231 = vsub.s32 0, %v230
  %v232 = vrot.slane %v227, %v231
  %v242 = vunpack.c.l.b16 %v219
  %v243 = vunpack.c.l.b16 %v220
  %v244 = vunpack.c.l.b16 %v221
  %v245 = vunpack.c.l.b16 %v222
  %v246 = vunpack.c.l.b16 %v223
  %v247 = vunpack.c.l.b16 %v224
  %v248 = vunpack.c.l.b16 %v225
  %v249 = vunpack.c.l.b16 %v226
  %v250 = vpack.c.b16 %v243, %v242
  %v251 = vpack.c.b16 %v245, %v244
  %v252 = vpack.c.b16 %v247, %v246
  %v253 = vpack.c.b16 %v249, %v248
  %vm258 = vcmask 523264
  %v260 = vsel %vm258, %v218, 0
  %262 = vmatprep.subr.bf16.mxu0 0
  %263 = vmatpush1.bf16.msra.mxu0 %v250
  %264 = vmatprep.subr.bf16.mxu0 0
  %265 = vmatpush1.bf16.msra.mxu0 %v251
  %266 = vmatprep.subr.bf16.mxu0 0
  %267 = vmatpush1.bf16.msra.mxu0 %v252
  %268 = vmatprep.subr.bf16.mxu0 0
  %269 = vmatpush1.bf16.msra.mxu0 %v253
  %270 = vmatprep.subr.bf16.mxu0 0
  %271 = vmatpush1.bf16.msra.mxu0 0
  %272 = vmatprep.subr.bf16.mxu0 0
  %273 = vmatpush1.bf16.msra.mxu0 0
  %274 = vmatprep.subr.bf16.mxu0 0
  %275 = vmatpush1.bf16.msra.mxu0 0
  %276 = vmatprep.subr.bf16.mxu0 0
  %277 = vmatpush1.bf16.msra.mxu0 0
  %278 = vmatprep.subr.bf16.mxu0 0
  %279 = vmatpush1.bf16.msra.mxu0 0
  %280 = vmatprep.subr.bf16.mxu0 0
  %281 = vmatpush1.bf16.msra.mxu0 0
  %282 = vmatprep.subr.bf16.mxu0 0
  %283 = vmatpush1.bf16.msra.mxu0 0
  %284 = vmatprep.subr.bf16.mxu0 0
  %285 = vmatpush1.bf16.msra.mxu0 0
  %286 = vmatprep.subr.bf16.mxu0 0
  %287 = vmatpush1.bf16.msra.mxu0 0
  %288 = vmatprep.subr.bf16.mxu0 0
  %289 = vmatpush1.bf16.msra.mxu0 0
  %290 = vmatprep.subr.bf16.mxu0 0
  %291 = vmatpush1.bf16.msra.mxu0 0
  %292 = vmatprep.subr.bf16.mxu0 0
  %293 = vmatpush1.bf16.msra.mxu0 0
  %294 = vmatprep.mubr.bf16.mxu0 0
  %295 = vmatmul.mubr.bf16.gmra.mrb[0].mxu0 %v260
  %v296 = vpop.f32.mrb[0].mxu0
  %v297 = vadd.f32 %v232, %v296
  %v298 = vpop.f32.mrb[0].mxu0
  %v299 = vpop.f32.mrb[0].mxu0
  %v300 = vpop.f32.mrb[0].mxu0
  %301 = vdwg.mxu0
  %302 = vmax.xlane.f32.xlu0 %v297
  %v303 = vpop.xlane.xlu0 %302
  %v304 = vsub.f32 %v297, %v303
  %v305 = vmul.f32 %v304, 1.442695
  %v306 = vpow.pop %v305
  %307 = vadd.xlane.f32.xlu0 %v306
  %v308 = vpop.xlane.xlu0 %307
  %v309 = vrcp.pop %v308
  %v310 = vmul.f32 %v306, %v309
  %vm311 = vcmask 15360
  %312 = vst.msk [vmem:[%s7] sm:$0xff] %vm311, %v310
  // Predicated region
  $region30: #{tpu_custom_call.1} parent=0 // pred_check
    _
  $region31: #{tpu_custom_call.1} parent=0 // pred_check_branch
    %314 = sbr.rel (0) target = $region33
  $region32: #{tpu_custom_call.1} parent=0 // pred_region
    _
  $region33: #{tpu_custom_call.1} parent=0 // pred_fallthru
    _
  // Predicated region
  $region34: #{tpu_custom_call.1} parent=0 // pred_check
    _
  $region35: #{tpu_custom_call.1} parent=0 // pred_check_branch
    %316 = sbr.rel (0) target = $region37
  $region36: #{tpu_custom_call.1} parent=0 // pred_region
    _
  $region37: #{tpu_custom_call.1} parent=0 // pred_fallthru
    _

</llo_original>
